<compile_context>
chip_gen: v7x
topology: tpu7x:2x2x1
jax: 0.10.0
libtpu: 0.0.40
codegen_flags: <defaults>
</compile_context>

<pallas_src>
import functools

import jax
import jax.numpy as jnp
from jax.experimental import pallas as pl
from jax.experimental.pallas import tpu as pltpu

_HIDDEN = 128
_MAX_TILE_B = 1024   # rows per grid step; comfortably within VMEM on v5e/v6e/v7x


def _reward_kernel(state_ref, action_ref,
                   w1s_ref, w1a_ref, b1_ref,
                   w2_ref, b2_ref,
                   w3_ref, b3_ref,
                   out_ref):
    # Layer 1 with the action-embedding Linear folded in:
    #   h1 = state @ W1_state + action @ (Wa @ W1_act) + (ba @ W1_act + b1)
    h = (jnp.dot(state_ref[...], w1s_ref[...], preferred_element_type=jnp.float32)
         + jnp.dot(action_ref[...], w1a_ref[...], preferred_element_type=jnp.float32)
         + b1_ref[...])
    h = jnp.maximum(h, 0.0)

    # Layer 2 (128 -> 128).
    h = (jnp.dot(h.astype(w2_ref.dtype), w2_ref[...],
                 preferred_element_type=jnp.float32)
         + b2_ref[...])
    h = jnp.maximum(h, 0.0)

    # Head (128 -> 1): VPU multiply + lane reduce instead of an N=1 MXU matmul.
    r = jnp.sum(h * w3_ref[...], axis=-1) + b3_ref[0]        # (TILE_B,)
    # Lane-dense store: one (1, TILE_B) row per grid step (unmasked vst).
    out_ref[...] = r[None, :].astype(out_ref.dtype)


def fold_params(params, compute_dtype=jnp.float32):
    """Fold the action-embedding Linear into trunk layer 1 (done once, outside the kernel)."""
    wa, ba, w1, b1, w2, b2, w3, b3 = params
    rep = wa.shape[1]
    w1s, w1a = w1[:rep], w1[rep:]
    w_act = wa @ w1a                     # (action_shape, 128)
    b1f = ba @ w1a + b1                  # (1, 128)
    w3row = w3.reshape(1, -1)            # (1, 128)
    return (w1s.astype(compute_dtype),
            w_act.astype(compute_dtype),
            b1f.astype(jnp.float32),
            w2.astype(compute_dtype),
            b2.astype(jnp.float32),
            w3row.astype(jnp.float32),
            b3.reshape(1).astype(jnp.float32))


@functools.partial(jax.jit, static_argnames=("compute_dtype",))
def reward_model_forward(state, action, params, compute_dtype=jnp.float32):
    """state: (B, rep) f32, action: (B, action_shape) f32 -> (B, 1) f32."""
    B, rep = state.shape
    act_dim = action.shape[1]
    hid = _HIDDEN

    # Batch tile: multiple of 128 (lane-dense output), capped for v7x's 64 MiB VMEM.
    tile_b = min(_MAX_TILE_B, max(128, ((B + 127) // 128) * 128))
    b_pad = ((B + tile_b - 1) // tile_b) * tile_b
    pad = b_pad - B
    if pad:
        state = jnp.pad(state, ((0, pad), (0, 0)))
        action = jnp.pad(action, ((0, pad), (0, 0)))
    state = state.astype(compute_dtype)
    action = action.astype(compute_dtype)

    w1s, w_act, b1f, w2, b2, w3row, b3 = fold_params(params, compute_dtype)

    def row_spec(cols):
        return pl.BlockSpec((tile_b, cols), lambda i: (i, 0))

    def const_spec(shape):
        return pl.BlockSpec(shape, lambda i: (0, 0))

    out = pl.pallas_call(
        _reward_kernel,
        out_shape=jax.ShapeDtypeStruct((1, b_pad), jnp.float32),
        grid=(b_pad // tile_b,),
        in_specs=[
            row_spec(rep),                       # state rows (pipelined per tile)
            row_spec(act_dim),                   # action rows (pipelined per tile)
            const_spec((rep, hid)),              # W1 state-half     (resident)
            const_spec((act_dim, hid)),          # Wa @ W1 act-half  (resident)
            const_spec((1, hid)),                # fused bias 1      (resident)
            const_spec((hid, hid)),              # W2                (resident)
            const_spec((1, hid)),                # b2                (resident)
            const_spec((1, hid)),                # W3 as a row       (resident)
            pl.BlockSpec(memory_space=pltpu.MemorySpace.SMEM),   # b3 scalar
        ],
        out_specs=pl.BlockSpec((1, tile_b), lambda i: (0, i)),
        compiler_params=pltpu.CompilerParams(
            dimension_semantics=("parallel",)),
    )(state, action, w1s, w_act, b1f, w2, b2, w3row, b3)

    return out.reshape(b_pad, 1)[:B]


def init_params(key, representation_size, action_shape, hidden=_HIDDEN):
    """Deterministic synthetic weights, stored [in_features, out_features] (transposed vs torch)."""
    ks = jax.random.split(key, 8)

    def u(k, shape, fan_in):
        bound = 1.0 / jnp.sqrt(fan_in)
        return jax.random.uniform(k, shape, jnp.float32, -bound, bound)

    wa = u(ks[0], (action_shape, representation_size), action_shape)
    ba = u(ks[1], (1, representation_size), action_shape)
    w1 = u(ks[2], (2 * representation_size, hidden), 2 * representation_size)
    b1 = u(ks[3], (1, hidden), 2 * representation_size)
    w2 = u(ks[4], (hidden, hidden), hidden)
    b2 = u(ks[5], (1, hidden), hidden)
    w3 = u(ks[6], (hidden, 1), hidden)
    b3 = u(ks[7], (1, 1), hidden)
    return (wa, ba, w1, b1, w2, b2, w3, b3)


def reference_forward(state, action, params):
    wa, ba, w1, b1, w2, b2, w3, b3 = params
    act_emb = action @ wa + ba
    h = jnp.concatenate([state, act_emb], axis=-1)
    h = jnp.maximum(h @ w1 + b1, 0.0)
    h = jnp.maximum(h @ w2 + b2, 0.0)
    return h @ w3 + b3


if __name__ == "__main__":
    representation_size = 32
    action_shape = 8
    batch = 2

    key = jax.random.PRNGKey(0)
    k_state, k_action, k_params = jax.random.split(key, 3)

    state = jax.random.normal(k_state, (batch, representation_size), jnp.float32)
    action = jax.random.normal(k_action, (batch, action_shape), jnp.float32)
    params = init_params(k_params, representation_size, action_shape)

    out = jax.block_until_ready(reward_model_forward(state, action, params))

    ref = reference_forward(state, action, params)
    assert out.shape == (batch, 1), out.shape
    assert jnp.allclose(out, ref, atol=1e-4, rtol=1e-4), (out, ref)

    print("KERNEL_OK")
</pallas_src>

<mosaic_0001>
module attributes {stable_mosaic.version = 11 : i64} {
  func.func @_reward_kernel(%arg0: i32, %arg1: memref<128x32xf32, #tpu.memory_space<vmem>>, %arg2: memref<128x8xf32, #tpu.memory_space<vmem>>, %arg3: memref<32x128xf32, #tpu.memory_space<vmem>>, %arg4: memref<8x128xf32, #tpu.memory_space<vmem>>, %arg5: memref<1x128xf32, #tpu.memory_space<vmem>>, %arg6: memref<128x128xf32, #tpu.memory_space<vmem>>, %arg7: memref<1x128xf32, #tpu.memory_space<vmem>>, %arg8: memref<1x128xf32, #tpu.memory_space<vmem>>, %arg9: memref<1xf32, #tpu.memory_space<smem>>, %arg10: memref<1x128xf32, #tpu.memory_space<vmem>>) attributes {dimension_semantics = [#tpu.dimension_semantics<parallel>], iteration_bounds = array<i64: 1>, scalar_prefetch = 0 : i64, scratch_operands = 0 : i64, tpu.core_type = #tpu.core_type<tc>, window_params = [{transform_indices = @transform_0, window_bounds = array<i64: 128, 32>}, {transform_indices = @transform_1, window_bounds = array<i64: 128, 8>}, {pipeline_mode = #tpu.pipeline_mode<synchronous>, transform_indices = @transform_2, window_bounds = array<i64: 32, 128>}, {pipeline_mode = #tpu.pipeline_mode<synchronous>, transform_indices = @transform_3, window_bounds = array<i64: 8, 128>}, {pipeline_mode = #tpu.pipeline_mode<synchronous>, transform_indices = @transform_4, window_bounds = array<i64: 1, 128>}, {pipeline_mode = #tpu.pipeline_mode<synchronous>, transform_indices = @transform_5, window_bounds = array<i64: 128, 128>}, {pipeline_mode = #tpu.pipeline_mode<synchronous>, transform_indices = @transform_6, window_bounds = array<i64: 1, 128>}, {pipeline_mode = #tpu.pipeline_mode<synchronous>, transform_indices = @transform_7, window_bounds = array<i64: 1, 128>}, {transform_indices = @transform_8, window_bounds = array<i64: 1>}, {transform_indices = @transform_9, window_bounds = array<i64: 1, 128>}]} {
    %c0 = arith.constant 0 : index
    %c0_0 = arith.constant 0 : index
    %0 = vector.load %arg1[%c0, %c0_0] : memref<128x32xf32, #tpu.memory_space<vmem>>, vector<128x32xf32>
    %c0_1 = arith.constant 0 : index
    %c0_2 = arith.constant 0 : index
    %1 = vector.load %arg3[%c0_1, %c0_2] : memref<32x128xf32, #tpu.memory_space<vmem>>, vector<32x128xf32>
    %cst = arith.constant dense<0.000000e+00> : vector<128x128xf32>
    %2 = tpu.matmul %0, %1, %cst {dimension_numbers = #tpu.dot_dimension_numbers<[1], [0], [0], [1], [0, 0, 1, 1], [], []>} : vector<128x32xf32>, vector<32x128xf32>, vector<128x128xf32> -> vector<128x128xf32>
    %c0_3 = arith.constant 0 : index
    %c0_4 = arith.constant 0 : index
    %3 = vector.load %arg2[%c0_3, %c0_4] : memref<128x8xf32, #tpu.memory_space<vmem>>, vector<128x8xf32>
    %c0_5 = arith.constant 0 : index
    %c0_6 = arith.constant 0 : index
    %4 = vector.load %arg4[%c0_5, %c0_6] : memref<8x128xf32, #tpu.memory_space<vmem>>, vector<8x128xf32>
    %cst_7 = arith.constant dense<0.000000e+00> : vector<128x128xf32>
    %5 = tpu.matmul %3, %4, %cst_7 {dimension_numbers = #tpu.dot_dimension_numbers<[1], [0], [0], [1], [0, 0, 1, 1], [], []>} : vector<128x8xf32>, vector<8x128xf32>, vector<128x128xf32> -> vector<128x128xf32>
    %6 = arith.addf %2, %5 : vector<128x128xf32>
    %c0_8 = arith.constant 0 : index
    %c0_9 = arith.constant 0 : index
    %7 = vector.load %arg5[%c0_8, %c0_9] : memref<1x128xf32, #tpu.memory_space<vmem>>, vector<1x128xf32>
    %8 = vector.broadcast %7 : vector<1x128xf32> to vector<128x128xf32>
    %9 = arith.addf %6, %8 : vector<128x128xf32>
    %cst_10 = arith.constant 0.000000e+00 : f32
    %10 = vector.broadcast %cst_10 : f32 to vector<128x128xf32>
    %11 = arith.maximumf %9, %10 : vector<128x128xf32>
    %c0_11 = arith.constant 0 : index
    %c0_12 = arith.constant 0 : index
    %12 = vector.load %arg6[%c0_11, %c0_12] : memref<128x128xf32, #tpu.memory_space<vmem>>, vector<128x128xf32>
    %cst_13 = arith.constant dense<0.000000e+00> : vector<128x128xf32>
    %13 = tpu.matmul %11, %12, %cst_13 {dimension_numbers = #tpu.dot_dimension_numbers<[1], [0], [0], [1], [0, 0, 1, 1], [], []>} : vector<128x128xf32>, vector<128x128xf32>, vector<128x128xf32> -> vector<128x128xf32>
    %c0_14 = arith.constant 0 : index
    %c0_15 = arith.constant 0 : index
    %14 = vector.load %arg7[%c0_14, %c0_15] : memref<1x128xf32, #tpu.memory_space<vmem>>, vector<1x128xf32>
    %15 = vector.broadcast %14 : vector<1x128xf32> to vector<128x128xf32>
    %16 = arith.addf %13, %15 : vector<128x128xf32>
    %cst_16 = arith.constant 0.000000e+00 : f32
    %17 = vector.broadcast %cst_16 : f32 to vector<128x128xf32>
    %18 = arith.maximumf %16, %17 : vector<128x128xf32>
    %c0_17 = arith.constant 0 : index
    %c0_18 = arith.constant 0 : index
    %19 = vector.load %arg8[%c0_17, %c0_18] : memref<1x128xf32, #tpu.memory_space<vmem>>, vector<1x128xf32>
    %20 = vector.broadcast %19 : vector<1x128xf32> to vector<128x128xf32>
    %21 = arith.mulf %18, %20 : vector<128x128xf32>
    %cst_19 = arith.constant dense<0.000000e+00> : vector<128xf32>
    %22 = vector.multi_reduction <add>, %21, %cst_19 [1] : vector<128x128xf32> to vector<128xf32>
    %c0_20 = arith.constant 0 : index
    %23 = memref.load %arg9[%c0_20] : memref<1xf32, #tpu.memory_space<smem>>
    %24 = vector.broadcast %23 : f32 to vector<128xf32>
    %25 = arith.addf %22, %24 : vector<128xf32>
    %26 = vector.shape_cast %25 : vector<128xf32> to vector<1x128xf32>
    %c0_21 = arith.constant 0 : index
    %c0_22 = arith.constant 0 : index
    %27 = vector.load %arg10[%c0_21, %c0_22] : memref<1x128xf32, #tpu.memory_space<vmem>>, vector<1x128xf32>
    tpu.vector_store %arg10[%c0_21, %c0_22], %26 {strides = array<i32>} : memref<1x128xf32, #tpu.memory_space<vmem>>, vector<1x128xf32>,
    return
  }
  func.func @transform_0(%arg0: i32) -> (i32, i32) {
    %c0_i32 = arith.constant 0 : i32
    %c0_i32_0 = arith.constant 0 : i32
    return %arg0, %c0_i32 : i32, i32
  }
  func.func @transform_1(%arg0: i32) -> (i32, i32) {
    %c0_i32 = arith.constant 0 : i32
    %c0_i32_0 = arith.constant 0 : i32
    return %arg0, %c0_i32 : i32, i32
  }
  func.func @transform_2(%arg0: i32) -> (i32, i32) {
    %c0_i32 = arith.constant 0 : i32
    %c0_i32_0 = arith.constant 0 : i32
    %c0_i32_1 = arith.constant 0 : i32
    return %c0_i32, %c0_i32_0 : i32, i32
  }
  func.func @transform_3(%arg0: i32) -> (i32, i32) {
    %c0_i32 = arith.constant 0 : i32
    %c0_i32_0 = arith.constant 0 : i32
    %c0_i32_1 = arith.constant 0 : i32
    return %c0_i32, %c0_i32_0 : i32, i32
  }
  func.func @transform_4(%arg0: i32) -> (i32, i32) {
    %c0_i32 = arith.constant 0 : i32
    %c0_i32_0 = arith.constant 0 : i32
    %c0_i32_1 = arith.constant 0 : i32
    return %c0_i32, %c0_i32_0 : i32, i32
  }
  func.func @transform_5(%arg0: i32) -> (i32, i32) {
    %c0_i32 = arith.constant 0 : i32
    %c0_i32_0 = arith.constant 0 : i32
    %c0_i32_1 = arith.constant 0 : i32
    return %c0_i32, %c0_i32_0 : i32, i32
  }
  func.func @transform_6(%arg0: i32) -> (i32, i32) {
    %c0_i32 = arith.constant 0 : i32
    %c0_i32_0 = arith.constant 0 : i32
    %c0_i32_1 = arith.constant 0 : i32
    return %c0_i32, %c0_i32_0 : i32, i32
  }
  func.func @transform_7(%arg0: i32) -> (i32, i32) {
    %c0_i32 = arith.constant 0 : i32
    %c0_i32_0 = arith.constant 0 : i32
    %c0_i32_1 = arith.constant 0 : i32
    return %c0_i32, %c0_i32_0 : i32, i32
  }
  func.func @transform_8(%arg0: i32) -> i32 {
    %c0_i32 = arith.constant 0 : i32
    %c0_i32_0 = arith.constant 0 : i32
    return %c0_i32 : i32
  }
  func.func @transform_9(%arg0: i32) -> (i32, i32) {
    %c0_i32 = arith.constant 0 : i32
    %c0_i32_0 = arith.constant 0 : i32
    return %c0_i32, %arg0 : i32, i32
  }
}

</mosaic_0001>

<llo_original>
// kernel: reward_model_forward.1
$region0: #{reward_model_forward.1}
  #allocation0 [shape = 'u32[]', space=smem, size = 0x4, offset = 0x4, fixed_abs, tag = 'smem constant byte address 0x4 - core index']
  #allocation1 [shape = 'u32[144,128]{1,0:T(1,128)}', space=vmem, size = 0x12000, scoped, tag = 'internal scratch']
  #allocation2 [shape = 'f32[1]{0:T(128)S(6)}', space=smem, size = 0x200, scoped, tag = 'scoped memory for reward_model_forward.1']
  %s0 = inlined_call_operand.vmem [shape: f32[128,32], index: 0, kind: input, shape index: {}]
  %s1 = inlined_call_operand.vmem [shape: f32[128,8], index: 1, kind: input, shape index: {}]
  %s2 = inlined_call_operand.vmem [shape: f32[32,128], index: 2, kind: input, shape index: {}]
  %s3 = inlined_call_operand.vmem [shape: f32[8,128], index: 3, kind: input, shape index: {}]
  %s4 = inlined_call_operand.vmem [shape: f32[1,128], index: 4, kind: input, shape index: {}]
  %s5 = inlined_call_operand.vmem [shape: f32[128,128], index: 5, kind: input, shape index: {}]
  %s6 = inlined_call_operand.vmem [shape: f32[1,128], index: 6, kind: input, shape index: {}]
  %s7 = inlined_call_operand.vmem [shape: f32[1,128], index: 7, kind: input, shape index: {}]
  %s8 = inlined_call_operand.<no memory space> [shape: f32[1], index: 8, kind: input, shape index: {}]
  %s9 = inlined_call_operand.vmem [shape: f32[1,128], index: 9, kind: output, shape index: {}]
  %s10 = sld [smem:[#allocation0]]
  $region46: #{reward_model_forward.1} parent=0
    _
  %s12 = ssub.s32 1, %s10
  %s13 = scalar_select 0, %s12, %s10
  %14 = sst [smem:[#allocation2]] %s8
  // Predicated region
  $region2: #{reward_model_forward.1} parent=0 // pred_check
    _
  $region3: #{reward_model_forward.1} parent=0 // pred_check_branch
    %16 = sbr.rel (0) target = $region5
  $region4: #{reward_model_forward.1} parent=0 // pred_region
    _
  $region5: #{reward_model_forward.1} parent=0 // pred_fallthru
    _
  // Predicated region
  $region6: #{reward_model_forward.1} parent=0 // pred_check
    _
  $region7: #{reward_model_forward.1} parent=0 // pred_check_branch
    %18 = sbr.rel (0) target = $region9
  $region8: #{reward_model_forward.1} parent=0 // pred_region
    _
  $region9: #{reward_model_forward.1} parent=0 // pred_fallthru
    _
  // Predicated region
  $region10: #{reward_model_forward.1} parent=0 // pred_check
    _
  $region11: #{reward_model_forward.1} parent=0 // pred_check_branch
    %20 = sbr.rel (0) target = $region13
  $region12: #{reward_model_forward.1} parent=0 // pred_region
    _
  $region13: #{reward_model_forward.1} parent=0 // pred_fallthru
    _
  // Predicated region
  $region14: #{reward_model_forward.1} parent=0 // pred_check
    _
  $region15: #{reward_model_forward.1} parent=0 // pred_check_branch
    %22 = sbr.rel (0) target = $region17
  $region16: #{reward_model_forward.1} parent=0 // pred_region
    _
  $region17: #{reward_model_forward.1} parent=0 // pred_fallthru
    _
  // Predicated region
  $region18: #{reward_model_forward.1} parent=0 // pred_check
    _
  $region19: #{reward_model_forward.1} parent=0 // pred_check_branch
    %24 = sbr.rel (0) target = $region21
  $region20: #{reward_model_forward.1} parent=0 // pred_region
    _
  $region21: #{reward_model_forward.1} parent=0 // pred_fallthru
    _
  // Predicated region
  $region22: #{reward_model_forward.1} parent=0 // pred_check
    _
  $region23: #{reward_model_forward.1} parent=0 // pred_check_branch
    %26 = sbr.rel (0) target = $region25
  $region24: #{reward_model_forward.1} parent=0 // pred_region
    _
  $region25: #{reward_model_forward.1} parent=0 // pred_fallthru
    _
  // Predicated region
  $region26: #{reward_model_forward.1} parent=0 // pred_check
    _
  $region27: #{reward_model_forward.1} parent=0 // pred_check_branch
    %28 = sbr.rel (0) target = $region29
  $region28: #{reward_model_forward.1} parent=0 // pred_region
    _
  $region29: #{reward_model_forward.1} parent=0 // pred_fallthru
    _
  // Predicated region
  $region30: #{reward_model_forward.1} parent=0 // pred_check
    _
  $region31: #{reward_model_forward.1} parent=0 // pred_check_branch
    %30 = sbr.rel (0) target = $region33
  $region32: #{reward_model_forward.1} parent=0 // pred_region
    _
  $region33: #{reward_model_forward.1} parent=0 // pred_fallthru
    _
  // Predicated region
  $region34: #{reward_model_forward.1} parent=0 // pred_check
    _
  $region35: #{reward_model_forward.1} parent=0 // pred_check_branch
    %32 = sbr.rel (0) target = $region37
  $region36: #{reward_model_forward.1} parent=0 // pred_region
    _
  $region37: #{reward_model_forward.1} parent=0 // pred_fallthru
    _
  %v33 = vld [vmem:[%s0] sm:$0xff]
  %v34 = vld [vmem:[%s0 + $0x8] sm:$0xff]
  %v35 = vld [vmem:[%s0 + $0x10] sm:$0xff]
  %v36 = vld [vmem:[%s0 + $0x18] sm:$0xff]
  %v37 = vld [vmem:[%s0 + $0x20] sm:$0xff]
  %v38 = vld [vmem:[%s0 + $0x28] sm:$0xff]
  %v39 = vld [vmem:[%s0 + $0x30] sm:$0xff]
  %v40 = vld [vmem:[%s0 + $0x38] sm:$0xff]
  %v41 = vld [vmem:[%s0 + $0x40] sm:$0xff]
  %v42 = vld [vmem:[%s0 + $0x48] sm:$0xff]
  %v43 = vld [vmem:[%s0 + $0x50] sm:$0xff]
  %v44 = vld [vmem:[%s0 + $0x58] sm:$0xff]
  %v45 = vld [vmem:[%s0 + $0x60] sm:$0xff]
  %v46 = vld [vmem:[%s0 + $0x68] sm:$0xff]
  %v47 = vld [vmem:[%s0 + $0x70] sm:$0xff]
  %v48 = vld [vmem:[%s0 + $0x78] sm:$0xff]
  %v49 = vld [vmem:[%s2] sm:$0xff]
  %v50 = vld [vmem:[%s2 + $0x8] sm:$0xff]
  %v51 = vld [vmem:[%s2 + $0x10] sm:$0xff]
  %v52 = vld [vmem:[%s2 + $0x18] sm:$0xff]
  %v53 = vld [vmem:[%s1] sm:$0xff]
  %v54 = vld [vmem:[%s1 + $0x8] sm:$0xff]
  %v55 = vld [vmem:[%s1 + $0x10] sm:$0xff]
  %v56 = vld [vmem:[%s1 + $0x18] sm:$0xff]
  %v57 = vld [vmem:[%s1 + $0x20] sm:$0xff]
  %v58 = vld [vmem:[%s1 + $0x28] sm:$0xff]
  %v59 = vld [vmem:[%s1 + $0x30] sm:$0xff]
  %v60 = vld [vmem:[%s1 + $0x38] sm:$0xff]
  %v61 = vld [vmem:[%s1 + $0x40] sm:$0xff]
  %v62 = vld [vmem:[%s1 + $0x48] sm:$0xff]
  %v63 = vld [vmem:[%s1 + $0x50] sm:$0xff]
  %v64 = vld [vmem:[%s1 + $0x58] sm:$0xff]
  %v65 = vld [vmem:[%s1 + $0x60] sm:$0xff]
  %v66 = vld [vmem:[%s1 + $0x68] sm:$0xff]
  %v67 = vld [vmem:[%s1 + $0x70] sm:$0xff]
  %v68 = vld [vmem:[%s1 + $0x78] sm:$0xff]
  %v69 = vld [vmem:[%s3] sm:$0xff]
  %vm70 = vcmask 64512
  %v72 = vsel %vm70, %v53, 0
  %v75 = vsel %vm70, %v54, 0
  %v78 = vsel %vm70, %v55, 0
  %v81 = vsel %vm70, %v56, 0
  %v84 = vsel %vm70, %v57, 0
  %v87 = vsel %vm70, %v58, 0
  %v90 = vsel %vm70, %v59, 0
  %v93 = vsel %vm70, %v60, 0
  %v96 = vsel %vm70, %v61, 0
  %v99 = vsel %vm70, %v62, 0
  %v102 = vsel %vm70, %v63, 0
  %v105 = vsel %vm70, %v64, 0
  %v108 = vsel %vm70, %v65, 0
  %v111 = vsel %vm70, %v66, 0
  %v114 = vsel %vm70, %v67, 0
  %v117 = vsel %vm70, %v68, 0
  %119 = vmatprep.subr.mxu0 0.0
  %120 = vmatpush1.msra.mxu0 %v69
  %121 = vmatprep.subr.mxu0 0.0
  %122 = vmatpush1.msra.mxu0 0.0
  %123 = vmatprep.subr.mxu0 0.0
  %124 = vmatpush1.msra.mxu0 0.0
  %125 = vmatprep.subr.mxu0 0.0
  %126 = vmatpush1.msra.mxu0 0.0
  %127 = vmatprep.subr.mxu0 0.0
  %128 = vmatpush1.msra.mxu0 0.0
  %129 = vmatprep.subr.mxu0 0.0
  %130 = vmatpush1.msra.mxu0 0.0
  %131 = vmatprep.subr.mxu0 0.0
  %132 = vmatpush1.msra.mxu0 0.0
  %133 = vmatprep.subr.mxu0 0.0
  %134 = vmatpush1.msra.mxu0 0.0
  %135 = vmatprep.subr.mxu0 0.0
  %136 = vmatpush1.msra.mxu0 0.0
  %137 = vmatprep.subr.mxu0 0.0
  %138 = vmatpush1.msra.mxu0 0.0
  %139 = vmatprep.subr.mxu0 0.0
  %140 = vmatpush1.msra.mxu0 0.0
  %141 = vmatprep.subr.mxu0 0.0
  %142 = vmatpush1.msra.mxu0 0.0
  %143 = vmatprep.subr.mxu0 0.0
  %144 = vmatpush1.msra.mxu0 0.0
  %145 = vmatprep.subr.mxu0 0.0
  %146 = vmatpush1.msra.mxu0 0.0
  %147 = vmatprep.subr.mxu0 0.0
  %148 = vmatpush1.msra.mxu0 0.0
  %149 = vmatprep.subr.mxu0 0.0
  %150 = vmatpush1.msra.mxu0 0.0
  %151 = vmatprep.subr.mxu0 0.0
  %152 = vmatpush1.msra.mxu0 0.0
  %153 = vmatprep.subr.mxu0 0.0
  %154 = vmatpush1.msra.mxu0 0.0
  %155 = vmatprep.subr.mxu0 0.0
  %156 = vmatpush1.msra.mxu0 0.0
  %157 = vmatprep.subr.mxu0 0.0
  %158 = vmatpush1.msra.mxu0 0.0
  %159 = vmatprep.subr.mxu0 0.0
  %160 = vmatpush1.msra.mxu0 0.0
  %161 = vmatprep.subr.mxu0 0.0
  %162 = vmatpush1.msra.mxu0 0.0
  %163 = vmatprep.subr.mxu0 0.0
  %164 = vmatpush1.msra.mxu0 0.0
  %165 = vmatprep.subr.mxu0 0.0
  %166 = vmatpush1.msra.mxu0 0.0
  %167 = vmatprep.subr.mxu0 0.0
  %168 = vmatpush1.msra.mxu0 0.0
  %169 = vmatprep.subr.mxu0 0.0
  %170 = vmatpush1.msra.mxu0 0.0
  %171 = vmatprep.subr.mxu0 0.0
  %172 = vmatpush1.msra.mxu0 0.0
  %173 = vmatprep.subr.mxu0 0.0
  %174 = vmatpush1.msra.mxu0 0.0
  %175 = vmatprep.subr.mxu0 0.0
  %176 = vmatpush1.msra.mxu0 0.0
  %177 = vmatprep.subr.mxu0 0.0
  %178 = vmatpush1.msra.mxu0 0.0
  %179 = vmatprep.subr.mxu0 0.0
  %180 = vmatpush1.msra.mxu0 0.0
  %181 = vmatprep.subr.mxu0 0.0
  %182 = vmatpush1.msra.mxu0 0.0
  %183 = vmatprep.mubr.f32.mxu0 0.0
  %184 = vmatmul.mubr.f32.gmra.mrb[0].mxu0 %v72
  %v185 = vpop.f32.mrb[0].mxu0
  %v186 = vadd.f32 0.0, %v185
  %v187 = vpop.f32.mrb[0].mxu0
  %188 = vmatprep.mubr.f32.mxu0 0.0
  %189 = vmatmul.mubr.f32.gmra.mrb[0].mxu0 %v75
  %v190 = vpop.f32.mrb[0].mxu0
  %v191 = vadd.f32 0.0, %v190
  %v192 = vpop.f32.mrb[0].mxu0
  %193 = vmatprep.mubr.f32.mxu0 0.0
  %194 = vmatmul.mubr.f32.gmra.mrb[0].mxu0 %v78
  %v195 = vpop.f32.mrb[0].mxu0
  %v196 = vadd.f32 0.0, %v195
  %v197 = vpop.f32.mrb[0].mxu0
  %198 = vmatprep.mubr.f32.mxu0 0.0
  %199 = vmatmul.mubr.f32.gmra.mrb[0].mxu0 %v81
  %v200 = vpop.f32.mrb[0].mxu0
  %v201 = vadd.f32 0.0, %v200
  %v202 = vpop.f32.mrb[0].mxu0
  %203 = vmatprep.mubr.f32.mxu0 0.0
  %204 = vmatmul.mubr.f32.gmra.mrb[0].mxu0 %v84
  %v205 = vpop.f32.mrb[0].mxu0
  %v206 = vadd.f32 0.0, %v205
  %v207 = vpop.f32.mrb[0].mxu0
  %208 = vmatprep.mubr.f32.mxu0 0.0
  %209 = vmatmul.mubr.f32.gmra.mrb[0].mxu0 %v87
  %v210 = vpop.f32.mrb[0].mxu0
  %v211 = vadd.f32 0.0, %v210
  %v212 = vpop.f32.mrb[0].mxu0
  %213 = vmatprep.mubr.f32.mxu0 0.0
  %214 = vmatmul.mubr.f32.gmra.mrb[0].mxu0 %v90
  %v215 = vpop.f32.mrb[0].mxu0
  %v216 = vadd.f32 0.0, %v215
  %v217 = vpop.f32.mrb[0].mxu0
  %218 = vmatprep.mubr.f32.mxu0 0.0
  %219 = vmatmul.mubr.f32.gmra.mrb[0].mxu0 %v93
  %v220 = vpop.f32.mrb[0].mxu0
  %v221 = vadd.f32 0.0, %v220
  %v222 = vpop.f32.mrb[0].mxu0
  %223 = vmatprep.mubr.f32.mxu0 0.0
  %224 = vmatmul.mubr.f32.gmra.mrb[0].mxu0 %v96
  %v225 = vpop.f32.mrb[0].mxu0
  %v226 = vadd.f32 0.0, %v225
  %v227 = vpop.f32.mrb[0].mxu0
  %228 = vmatprep.mubr.f32.mxu0 0.0
  %229 = vmatmul.mubr.f32.gmra.mrb[0].mxu0 %v99
  %v230 = vpop.f32.mrb[0].mxu0
  %v231 = vadd.f32 0.0, %v230
  %v232 = vpop.f32.mrb[0].mxu0
  %233 = vmatprep.mubr.f32.mxu0 0.0
  %234 = vmatmul.mubr.f32.gmra.mrb[0].mxu0 %v102
  %v235 = vpop.f32.mrb[0].mxu0
  %v236 = vadd.f32 0.0, %v235
  %v237 = vpop.f32.mrb[0].mxu0
  %238 = vmatprep.mubr.f32.mxu0 0.0
  %239 = vmatmul.mubr.f32.gmra.mrb[0].mxu0 %v105
  %v240 = vpop.f32.mrb[0].mxu0
  %v241 = vadd.f32 0.0, %v240
  %v242 = vpop.f32.mrb[0].mxu0
  %243 = vmatprep.mubr.f32.mxu0 0.0
  %244 = vmatmul.mubr.f32.gmra.mrb[0].mxu0 %v108
  %v245 = vpop.f32.mrb[0].mxu0
  %v246 = vadd.f32 0.0, %v245
  %v247 = vpop.f32.mrb[0].mxu0
  %248 = vmatprep.mubr.f32.mxu0 0.0
  %249 = vmatmul.mubr.f32.gmra.mrb[0].mxu0 %v111
  %v250 = vpop.f32.mrb[0].mxu0
  %v251 = vadd.f32 0.0, %v250
  %v252 = vpop.f32.mrb[0].mxu0
  %253 = vmatprep.mubr.f32.mxu0 0.0
  %254 = vmatmul.mubr.f32.gmra.mrb[0].mxu0 %v114
  %v255 = vpop.f32.mrb[0].mxu0
  %v256 = vadd.f32 0.0, %v255
  %v257 = vpop.f32.mrb[0].mxu0
  %258 = vmatprep.mubr.f32.mxu0 0.0
  %259 = vmatmul.mubr.f32.gmra.mrb[0].mxu0 %v117
  %v260 = vpop.f32.mrb[0].mxu0
  %v261 = vadd.f32 0.0, %v260
  %v262 = vpop.f32.mrb[0].mxu0
  %263 = vdwg.mxu0
  %vm264 = vcmask 261120
  %v266 = vsel %vm264, %v33, 0
  %v269 = vsel %vm264, %v34, 0
  %v272 = vsel %vm264, %v35, 0
  %v275 = vsel %vm264, %v36, 0
  %v278 = vsel %vm264, %v37, 0
  %v281 = vsel %vm264, %v38, 0
  %v284 = vsel %vm264, %v39, 0
  %v287 = vsel %vm264, %v40, 0
  %v290 = vsel %vm264, %v41, 0
  %v293 = vsel %vm264, %v42, 0
  %v296 = vsel %vm264, %v43, 0
  %v299 = vsel %vm264, %v44, 0
  %v302 = vsel %vm264, %v45, 0
  %v305 = vsel %vm264, %v46, 0
  %v308 = vsel %vm264, %v47, 0
  %v311 = vsel %vm264, %v48, 0
  %313 = vmatprep.subr.mxu0 0.0
  %314 = vmatpush1.msra.mxu0 %v49
  %315 = vmatprep.subr.mxu0 0.0
  %316 = vmatpush1.msra.mxu0 %v50
  %317 = vmatprep.subr.mxu0 0.0
  %318 = vmatpush1.msra.mxu0 %v51
  %319 = vmatprep.subr.mxu0 0.0
  %320 = vmatpush1.msra.mxu0 %v52
  %321 = vmatprep.subr.mxu0 0.0
  %322 = vmatpush1.msra.mxu0 0.0
  %323 = vmatprep.subr.mxu0 0.0
  %324 = vmatpush1.msra.mxu0 0.0
  %325 = vmatprep.subr.mxu0 0.0
  %326 = vmatpush1.msra.mxu0 0.0
  %327 = vmatprep.subr.mxu0 0.0
  %328 = vmatpush1.msra.mxu0 0.0
  %329 = vmatprep.subr.mxu0 0.0
  %330 = vmatpush1.msra.mxu0 0.0
  %331 = vmatprep.subr.mxu0 0.0
  %332 = vmatpush1.msra.mxu0 0.0
  %333 = vmatprep.subr.mxu0 0.0
  %334 = vmatpush1.msra.mxu0 0.0
  %335 = vmatprep.subr.mxu0 0.0
  %336 = vmatpush1.msra.mxu0 0.0
  %337 = vmatprep.subr.mxu0 0.0
  %338 = vmatpush1.msra.mxu0 0.0
  %339 = vmatprep.subr.mxu0 0.0
  %340 = vmatpush1.msra.mxu0 0.0
  %341 = vmatprep.subr.mxu0 0.0
  %342 = vmatpush1.msra.mxu0 0.0
  %343 = vmatprep.subr.mxu0 0.0
  %344 = vmatpush1.msra.mxu0 0.0
  %345 = vmatprep.subr.mxu0 0.0
  %346 = vmatpush1.msra.mxu0 0.0
  %347 = vmatprep.subr.mxu0 0.0
  %348 = vmatpush1.msra.mxu0 0.0
  %349 = vmatprep.subr.mxu0 0.0
  %350 = vmatpush1.msra.mxu0 0.0
  %351 = vmatprep.subr.mxu0 0.0
  %352 = vmatpush1.msra.mxu0 0.0
  %353 = vmatprep.subr.mxu0 0.0
  %354 = vmatpush1.msra.mxu0 0.0
  %355 = vmatprep.subr.mxu0 0.0
  %356 = vmatpush1.msra.mxu0 0.0
  %357 = vmatprep.subr.mxu0 0.0
  %358 = vmatpush1.msra.mxu0 0.0
  %359 = vmatprep.subr.mxu0 0.0
  %360 = vmatpush1.msra.mxu0 0.0
  %361 = vmatprep.subr.mxu0 0.0
  %362 = vmatpush1.msra.mxu0 0.0
  %363 = vmatprep.subr.mxu0 0.0
  %364 = vmatpush1.msra.mxu0 0.0
  %365 = vmatprep.subr.mxu0 0.0
  %366 = vmatpush1.msra.mxu0 0.0
  %367 = vmatprep.subr.mxu0 0.0
  %368 = vmatpush1.msra.mxu0 0.0
  %369 = vmatprep.subr.mxu0 0.0
  %370 = vmatpush1.msra.mxu0 0.0
  %371 = vmatprep.subr.mxu0 0.0
  %372 = vmatpush1.msra.mxu0 0.0
  %373 = vmatprep.subr.mxu0 0.0
  %374 = vmatpush1.msra.mxu0 0.0
  %375 = vmatprep.subr.mxu0 0.0
  %376 = vmatpush1.msra.mxu0 0.0
  %377 = vmatprep.mubr.f32.mxu0 0.0
  %378 = vmatmul.mubr.f32.gmra.mrb[0].mxu0 %v266
  %v379 = vpop.f32.mrb[0].mxu0
  %v380 = vadd.f32 %v186, %v379
  %v381 = vpop.f32.mrb[0].mxu0
  %382 = vmatprep.mubr.f32.mxu0 0.0
  %383 = vmatmul.mubr.f32.gmra.mrb[0].mxu0 %v269
  %v384 = vpop.f32.mrb[0].mxu0
  %v385 = vadd.f32 %v191, %v384
  %v386 = vpop.f32.mrb[0].mxu0
  %387 = vmatprep.mubr.f32.mxu0 0.0
  %388 = vmatmul.mubr.f32.gmra.mrb[0].mxu0 %v272
  %v389 = vpop.f32.mrb[0].mxu0
  %v390 = vadd.f32 %v196, %v389
  %v391 = vpop.f32.mrb[0].mxu0
  %392 = vmatprep.mubr.f32.mxu0 0.0
  %393 = vmatmul.mubr.f32.gmra.mrb[0].mxu0 %v275
  %v394 = vpop.f32.mrb[0].mxu0
  %v395 = vadd.f32 %v201, %v394
  %v396 = vpop.f32.mrb[0].mxu0
  %397 = vmatprep.mubr.f32.mxu0 0.0
  %398 = vmatmul.mubr.f32.gmra.mrb[0].mxu0 %v278
  %v399 = vpop.f32.mrb[0].mxu0
  %v400 = vadd.f32 %v206, %v399
  %v401 = vpop.f32.mrb[0].mxu0
  %402 = vmatprep.mubr.f32.mxu0 0.0
  %403 = vmatmul.mubr.f32.gmra.mrb[0].mxu0 %v281
  %v404 = vpop.f32.mrb[0].mxu0
  %v405 = vadd.f32 %v211, %v404
  %v406 = vpop.f32.mrb[0].mxu0
  %407 = vmatprep.mubr.f32.mxu0 0.0
  %408 = vmatmul.mubr.f32.gmra.mrb[0].mxu0 %v284
  %v409 = vpop.f32.mrb[0].mxu0
  %v410 = vadd.f32 %v216, %v409
  %v411 = vpop.f32.mrb[0].mxu0
  %412 = vmatprep.mubr.f32.mxu0 0.0
  %413 = vmatmul.mubr.f32.gmra.mrb[0].mxu0 %v287
  %v414 = vpop.f32.mrb[0].mxu0
  %v415 = vadd.f32 %v221, %v414
  %v416 = vpop.f32.mrb[0].mxu0
  %417 = vmatprep.mubr.f32.mxu0 0.0
  %418 = vmatmul.mubr.f32.gmra.mrb[0].mxu0 %v290
  %v419 = vpop.f32.mrb[0].mxu0
  %v420 = vadd.f32 %v226, %v419
  %v421 = vpop.f32.mrb[0].mxu0
  %422 = vmatprep.mubr.f32.mxu0 0.0
  %423 = vmatmul.mubr.f32.gmra.mrb[0].mxu0 %v293
  %v424 = vpop.f32.mrb[0].mxu0
  %v425 = vadd.f32 %v231, %v424
  %v426 = vpop.f32.mrb[0].mxu0
  %427 = vmatprep.mubr.f32.mxu0 0.0
  %428 = vmatmul.mubr.f32.gmra.mrb[0].mxu0 %v296
  %v429 = vpop.f32.mrb[0].mxu0
  %v430 = vadd.f32 %v236, %v429
  %v431 = vpop.f32.mrb[0].mxu0
  %432 = vmatprep.mubr.f32.mxu0 0.0
  %433 = vmatmul.mubr.f32.gmra.mrb[0].mxu0 %v299
  %v434 = vpop.f32.mrb[0].mxu0
  %v435 = vadd.f32 %v241, %v434
  %v436 = vpop.f32.mrb[0].mxu0
  %437 = vmatprep.mubr.f32.mxu0 0.0
  %438 = vmatmul.mubr.f32.gmra.mrb[0].mxu0 %v302
  %v439 = vpop.f32.mrb[0].mxu0
  %v440 = vadd.f32 %v246, %v439
  %v441 = vpop.f32.mrb[0].mxu0
  %442 = vmatprep.mubr.f32.mxu0 0.0
  %443 = vmatmul.mubr.f32.gmra.mrb[0].mxu0 %v305
  %v444 = vpop.f32.mrb[0].mxu0
  %v445 = vadd.f32 %v251, %v444
  %v446 = vpop.f32.mrb[0].mxu0
  %447 = vmatprep.mubr.f32.mxu0 0.0
  %448 = vmatmul.mubr.f32.gmra.mrb[0].mxu0 %v308
  %v449 = vpop.f32.mrb[0].mxu0
  %v450 = vadd.f32 %v256, %v449
  %v451 = vpop.f32.mrb[0].mxu0
  %452 = vmatprep.mubr.f32.mxu0 0.0
  %453 = vmatmul.mubr.f32.gmra.mrb[0].mxu0 %v311
  %v454 = vpop.f32.mrb[0].mxu0
  %v455 = vadd.f32 %v261, %v454
  %v456 = vpop.f32.mrb[0].mxu0
  %457 = vdwg.mxu0
  %v458 = vld [vmem:[%s4] sm:$0x1]
  %v460 = vlaneseq
  %v461 = vshrl.u32 %v460, 7
  %v462 = vsub.s32 0, %v461
  %v463 = vrot.slane %v458, %v462
  %v465 = vadd.f32 %v380, %v463
  %v466 = vadd.f32 %v385, %v463
  %v467 = vadd.f32 %v390, %v463
  %v468 = vadd.f32 %v395, %v463
  %v469 = vadd.f32 %v400, %v463
  %v470 = vadd.f32 %v405, %v463
  %v471 = vadd.f32 %v410, %v463
  %v472 = vadd.f32 %v415, %v463
  %v473 = vadd.f32 %v420, %v463
  %v474 = vadd.f32 %v425, %v463
  %v475 = vadd.f32 %v430, %v463
  %v476 = vadd.f32 %v435, %v463
  %v477 = vadd.f32 %v440, %v463
  %v478 = vadd.f32 %v445, %v463
  %v479 = vadd.f32 %v450, %v463
  %v480 = vadd.f32 %v455, %v463
  %v481 = vmax.f32 %v465, 0.0
  %v482 = vmax.f32 %v466, 0.0
  %v483 = vmax.f32 %v467, 0.0
  %v484 = vmax.f32 %v468, 0.0
  %v485 = vmax.f32 %v469, 0.0
  %v486 = vmax.f32 %v470, 0.0
  %v487 = vmax.f32 %v471, 0.0
  %v488 = vmax.f32 %v472, 0.0
  %v489 = vmax.f32 %v473, 0.0
  %v490 = vmax.f32 %v474, 0.0
  %v491 = vmax.f32 %v475, 0.0
  %v492 = vmax.f32 %v476, 0.0
  %v493 = vmax.f32 %v477, 0.0
  %v494 = vmax.f32 %v478, 0.0
  %v495 = vmax.f32 %v479, 0.0
  %v496 = vmax.f32 %v480, 0.0
  %v497 = vld [vmem:[%s5] sm:$0xff]
  %v498 = vld [vmem:[%s5 + $0x8] sm:$0xff]
  %v499 = vld [vmem:[%s5 + $0x10] sm:$0xff]
  %v500 = vld [vmem:[%s5 + $0x18] sm:$0xff]
  %v501 = vld [vmem:[%s5 + $0x20] sm:$0xff]
  %v502 = vld [vmem:[%s5 + $0x28] sm:$0xff]
  %v503 = vld [vmem:[%s5 + $0x30] sm:$0xff]
  %v504 = vld [vmem:[%s5 + $0x38] sm:$0xff]
  %v505 = vld [vmem:[%s5 + $0x40] sm:$0xff]
  %v506 = vld [vmem:[%s5 + $0x48] sm:$0xff]
  %v507 = vld [vmem:[%s5 + $0x50] sm:$0xff]
  %v508 = vld [vmem:[%s5 + $0x58] sm:$0xff]
  %v509 = vld [vmem:[%s5 + $0x60] sm:$0xff]
  %v510 = vld [vmem:[%s5 + $0x68] sm:$0xff]
  %v511 = vld [vmem:[%s5 + $0x70] sm:$0xff]
  %v512 = vld [vmem:[%s5 + $0x78] sm:$0xff]
  %v513 = vld [vmem:[%s6] sm:$0x1]
  %v515 = vlaneseq
  %v516 = vshrl.u32 %v515, 7
  %v517 = vsub.s32 0, %v516
  %v518 = vrot.slane %v513, %v517
  %520 = vmatprep.subr.mxu0 0.0
  %521 = vmatpush1.msra.mxu0 %v497
  %522 = vmatprep.subr.mxu0 0.0
  %523 = vmatpush1.msra.mxu0 %v498
  %524 = vmatprep.subr.mxu0 0.0
  %525 = vmatpush1.msra.mxu0 %v499
  %526 = vmatprep.subr.mxu0 0.0
  %527 = vmatpush1.msra.mxu0 %v500
  %528 = vmatprep.subr.mxu0 0.0
  %529 = vmatpush1.msra.mxu0 %v501
  %530 = vmatprep.subr.mxu0 0.0
  %531 = vmatpush1.msra.mxu0 %v502
  %532 = vmatprep.subr.mxu0 0.0
  %533 = vmatpush1.msra.mxu0 %v503
  %534 = vmatprep.subr.mxu0 0.0
  %535 = vmatpush1.msra.mxu0 %v504
  %536 = vmatprep.subr.mxu0 0.0
  %537 = vmatpush1.msra.mxu0 %v505
  %538 = vmatprep.subr.mxu0 0.0
  %539 = vmatpush1.msra.mxu0 %v506
  %540 = vmatprep.subr.mxu0 0.0
  %541 = vmatpush1.msra.mxu0 %v507
  %542 = vmatprep.subr.mxu0 0.0
  %543 = vmatpush1.msra.mxu0 %v508
  %544 = vmatprep.subr.mxu0 0.0
  %545 = vmatpush1.msra.mxu0 %v509
  %546 = vmatprep.subr.mxu0 0.0
  %547 = vmatpush1.msra.mxu0 %v510
  %548 = vmatprep.subr.mxu0 0.0
  %549 = vmatpush1.msra.mxu0 %v511
  %550 = vmatprep.subr.mxu0 0.0
  %551 = vmatpush1.msra.mxu0 %v512
  %552 = vmatprep.subr.mxu0 0.0
  %553 = vmatpush1.msra.mxu0 0.0
  %554 = vmatprep.subr.mxu0 0.0
  %555 = vmatpush1.msra.mxu0 0.0
  %556 = vmatprep.subr.mxu0 0.0
  %557 = vmatpush1.msra.mxu0 0.0
  %558 = vmatprep.subr.mxu0 0.0
  %559 = vmatpush1.msra.mxu0 0.0
  %560 = vmatprep.subr.mxu0 0.0
  %561 = vmatpush1.msra.mxu0 0.0
  %562 = vmatprep.subr.mxu0 0.0
  %563 = vmatpush1.msra.mxu0 0.0
  %564 = vmatprep.subr.mxu0 0.0
  %565 = vmatpush1.msra.mxu0 0.0
  %566 = vmatprep.subr.mxu0 0.0
  %567 = vmatpush1.msra.mxu0 0.0
  %568 = vmatprep.subr.mxu0 0.0
  %569 = vmatpush1.msra.mxu0 0.0
  %570 = vmatprep.subr.mxu0 0.0
  %571 = vmatpush1.msra.mxu0 0.0
  %572 = vmatprep.subr.mxu0 0.0
  %573 = vmatpush1.msra.mxu0 0.0
  %574 = vmatprep.subr.mxu0 0.0
  %575 = vmatpush1.msra.mxu0 0.0
  %576 = vmatprep.subr.mxu0 0.0
  %577 = vmatpush1.msra.mxu0 0.0
  %578 = vmatprep.subr.mxu0 0.0
  %579 = vmatpush1.msra.mxu0 0.0
  %580 = vmatprep.subr.mxu0 0.0
  %581 = vmatpush1.msra.mxu0 0.0
  %582 = vmatprep.subr.mxu0 0.0
  %583 = vmatpush1.msra.mxu0 0.0
  %584 = vmatprep.mubr.f32.mxu0 0.0
  %585 = vmatmul.mubr.f32.gmra.mrb[0].mxu0 %v481
  %v586 = vpop.f32.mrb[0].mxu0
  %v587 = vadd.f32 %v518, %v586
  %v588 = vpop.f32.mrb[0].mxu0
  %589 = vmatprep.mubr.f32.mxu0 0.0
  %590 = vmatmul.mubr.f32.gmra.mrb[0].mxu0 %v482
  %v591 = vpop.f32.mrb[0].mxu0
  %v592 = vadd.f32 %v518, %v591
  %v593 = vpop.f32.mrb[0].mxu0
  %594 = vmatprep.mubr.f32.mxu0 0.0
  %595 = vmatmul.mubr.f32.gmra.mrb[0].mxu0 %v483
  %v596 = vpop.f32.mrb[0].mxu0
  %v597 = vadd.f32 %v518, %v596
  %v598 = vpop.f32.mrb[0].mxu0
  %599 = vmatprep.mubr.f32.mxu0 0.0
  %600 = vmatmul.mubr.f32.gmra.mrb[0].mxu0 %v484
  %v601 = vpop.f32.mrb[0].mxu0
  %v602 = vadd.f32 %v518, %v601
  %v603 = vpop.f32.mrb[0].mxu0
  %604 = vmatprep.mubr.f32.mxu0 0.0
  %605 = vmatmul.mubr.f32.gmra.mrb[0].mxu0 %v485
  %v606 = vpop.f32.mrb[0].mxu0
  %v607 = vadd.f32 %v518, %v606
  %v608 = vpop.f32.mrb[0].mxu0
  %609 = vmatprep.mubr.f32.mxu0 0.0
  %610 = vmatmul.mubr.f32.gmra.mrb[0].mxu0 %v486
  %v611 = vpop.f32.mrb[0].mxu0
  %v612 = vadd.f32 %v518, %v611
  %v613 = vpop.f32.mrb[0].mxu0
  %614 = vmatprep.mubr.f32.mxu0 0.0
  %615 = vmatmul.mubr.f32.gmra.mrb[0].mxu0 %v487
  %v616 = vpop.f32.mrb[0].mxu0
  %v617 = vadd.f32 %v518, %v616
  %v618 = vpop.f32.mrb[0].mxu0
  %619 = vmatprep.mubr.f32.mxu0 0.0
  %620 = vmatmul.mubr.f32.gmra.mrb[0].mxu0 %v488
  %v621 = vpop.f32.mrb[0].mxu0
  %v622 = vadd.f32 %v518, %v621
  %v623 = vpop.f32.mrb[0].mxu0
  %624 = vmatprep.mubr.f32.mxu0 0.0
  %625 = vmatmul.mubr.f32.gmra.mrb[0].mxu0 %v489
  %v626 = vpop.f32.mrb[0].mxu0
  %v627 = vadd.f32 %v518, %v626
  %v628 = vpop.f32.mrb[0].mxu0
  %629 = vmatprep.mubr.f32.mxu0 0.0
  %630 = vmatmul.mubr.f32.gmra.mrb[0].mxu0 %v490
  %v631 = vpop.f32.mrb[0].mxu0
  %v632 = vadd.f32 %v518, %v631
  %v633 = vpop.f32.mrb[0].mxu0
  %634 = vmatprep.mubr.f32.mxu0 0.0
  %635 = vmatmul.mubr.f32.gmra.mrb[0].mxu0 %v491
  %v636 = vpop.f32.mrb[0].mxu0
  %v637 = vadd.f32 %v518, %v636
  %v638 = vpop.f32.mrb[0].mxu0
  %639 = vmatprep.mubr.f32.mxu0 0.0
  %640 = vmatmul.mubr.f32.gmra.mrb[0].mxu0 %v492
  %v641 = vpop.f32.mrb[0].mxu0
  %v642 = vadd.f32 %v518, %v641
  %v643 = vpop.f32.mrb[0].mxu0
  %644 = vmatprep.mubr.f32.mxu0 0.0
  %645 = vmatmul.mubr.f32.gmra.mrb[0].mxu0 %v493
  %v646 = vpop.f32.mrb[0].mxu0
  %v647 = vadd.f32 %v518, %v646
  %v648 = vpop.f32.mrb[0].mxu0
  %649 = vmatprep.mubr.f32.mxu0 0.0
  %650 = vmatmul.mubr.f32.gmra.mrb[0].mxu0 %v494
  %v651 = vpop.f32.mrb[0].mxu0
  %v652 = vadd.f32 %v518, %v651
  %v653 = vpop.f32.mrb[0].mxu0
  %654 = vmatprep.mubr.f32.mxu0 0.0
  %655 = vmatmul.mubr.f32.gmra.mrb[0].mxu0 %v495
  %v656 = vpop.f32.mrb[0].mxu0
  %v657 = vadd.f32 %v518, %v656
  %v658 = vpop.f32.mrb[0].mxu0
  %659 = vmatprep.mubr.f32.mxu0 0.0
  %660 = vmatmul.mubr.f32.gmra.mrb[0].mxu0 %v496
  %v661 = vpop.f32.mrb[0].mxu0
  %v662 = vadd.f32 %v518, %v661
  %v663 = vpop.f32.mrb[0].mxu0
  %664 = vdwg.mxu0
  %v665 = vmax.f32 %v587, 0.0
  %v666 = vmax.f32 %v592, 0.0
  %v667 = vmax.f32 %v597, 0.0
  %v668 = vmax.f32 %v602, 0.0
  %v669 = vmax.f32 %v607, 0.0
  %v670 = vmax.f32 %v612, 0.0
  %v671 = vmax.f32 %v617, 0.0
  %v672 = vmax.f32 %v622, 0.0
  %v673 = vmax.f32 %v627, 0.0
  %v674 = vmax.f32 %v632, 0.0
  %v675 = vmax.f32 %v637, 0.0
  %v676 = vmax.f32 %v642, 0.0
  %v677 = vmax.f32 %v647, 0.0
  %v678 = vmax.f32 %v652, 0.0
  %v679 = vmax.f32 %v657, 0.0
  %v680 = vmax.f32 %v662, 0.0
  %v681 = vld [vmem:[%s7] sm:$0x1]
  %v683 = vlaneseq
  %v684 = vshrl.u32 %v683, 7
  %v685 = vsub.s32 0, %v684
  %v686 = vrot.slane %v681, %v685
  %v688 = vmul.f32 %v665, %v686
  %v689 = vmul.f32 %v666, %v686
  %v690 = vmul.f32 %v667, %v686
  %v691 = vmul.f32 %v668, %v686
  %v692 = vmul.f32 %v669, %v686
  %v693 = vmul.f32 %v670, %v686
  %v694 = vmul.f32 %v671, %v686
  %v695 = vmul.f32 %v672, %v686
  %v696 = vmul.f32 %v673, %v686
  %v697 = vmul.f32 %v674, %v686
  %v698 = vmul.f32 %v675, %v686
  %v699 = vmul.f32 %v676, %v686
  %v700 = vmul.f32 %v677, %v686
  %v701 = vmul.f32 %v678, %v686
  %v702 = vmul.f32 %v679, %v686
  %v703 = vmul.f32 %v680, %v686
  %704 = vadd.xlane.f32.xlu0 %v688
  %v705 = vpop.xlane.xlu0 %704
  %706 = vadd.xlane.f32.xlu0 %v689
  %v707 = vpop.xlane.xlu0 %706
  %708 = vadd.xlane.f32.xlu0 %v690
  %v709 = vpop.xlane.xlu0 %708
  %710 = vadd.xlane.f32.xlu0 %v691
  %v711 = vpop.xlane.xlu0 %710
  %712 = vadd.xlane.f32.xlu0 %v692
  %v713 = vpop.xlane.xlu0 %712
  %714 = vadd.xlane.f32.xlu0 %v693
  %v715 = vpop.xlane.xlu0 %714
  %716 = vadd.xlane.f32.xlu0 %v694
  %v717 = vpop.xlane.xlu0 %716
  %718 = vadd.xlane.f32.xlu0 %v695
  %v719 = vpop.xlane.xlu0 %718
  %720 = vadd.xlane.f32.xlu0 %v696
  %v721 = vpop.xlane.xlu0 %720
  %722 = vadd.xlane.f32.xlu0 %v697
  %v723 = vpop.xlane.xlu0 %722
  %724 = vadd.xlane.f32.xlu0 %v698
  %v725 = vpop.xlane.xlu0 %724
  %726 = vadd.xlane.f32.xlu0 %v699
  %v727 = vpop.xlane.xlu0 %726
  %728 = vadd.xlane.f32.xlu0 %v700
  %v729 = vpop.xlane.xlu0 %728
  %730 = vadd.xlane.f32.xlu0 %v701
  %v731 = vpop.xlane.xlu0 %730
  %732 = vadd.xlane.f32.xlu0 %v702
  %v733 = vpop.xlane.xlu0 %732
  %734 = vadd.xlane.f32.xlu0 %v703
  %v735 = vpop.xlane.xlu0 %734
  %s736 = sld [smem:[#allocation2]]
  %v737 = vstv %s736
  %v738 = vadd.f32 %v705, %v737
  %v739 = vadd.f32 %v707, %v737
  %v740 = vadd.f32 %v709, %v737
  %v741 = vadd.f32 %v711, %v737
  %v742 = vadd.f32 %v713, %v737
  %v743 = vadd.f32 %v715, %v737
  %v744 = vadd.f32 %v717, %v737
  %v745 = vadd.f32 %v719, %v737
  %v746 = vadd.f32 %v721, %v737
  %v747 = vadd.f32 %v723, %v737
  %v748 = vadd.f32 %v725, %v737
  %v749 = vadd.f32 %v727, %v737
  %v750 = vadd.f32 %v729, %v737
  %v751 = vadd.f32 %v731, %v737
  %v752 = vadd.f32 %v733, %v737
  %v753 = vadd.f32 %v735, %v737
  %v770 = vlaneseq
  %v771 = vand.u32 %v770, 127
  %v772 = vlaneseq
  %v773 = vshrl.u32 %v772, 7
  %v774 = vsub.s32 %v771, %v773
  %v775 = vrot.slane %v738, %v774
  %v776 = vadd.s32 %v771, 4294967288
  %v777 = vlaneseq
  %v778 = vshrl.u32 %v777, 7
  %v779 = vsub.s32 %v776, %v778
  %v780 = vrot.slane %v739, %v779
  %vm781 = vcmask 130112
  %v782 = vsel %vm781, %v780, %v775
  %v783 = vadd.s32 %v771, 4294967280
  %v784 = vlaneseq
  %v785 = vshrl.u32 %v784, 7
  %v786 = vsub.s32 %v783, %v785
  %v787 = vrot.slane %v740, %v786
  %vm788 = vcmask 195712
  %v789 = vsel %vm788, %v787, %v782
  %v790 = vadd.s32 %v771, 4294967272
  %v791 = vlaneseq
  %v792 = vshrl.u32 %v791, 7
  %v793 = vsub.s32 %v790, %v792
  %v794 = vrot.slane %v741, %v793
  %vm795 = vcmask 261312
  %v796 = vsel %vm795, %v794, %v789
  %v797 = vadd.s32 %v771, 4294967264
  %v798 = vlaneseq
  %v799 = vshrl.u32 %v798, 7
  %v800 = vsub.s32 %v797, %v799
  %v801 = vrot.slane %v742, %v800
  %vm802 = vcmask 326912
  %v803 = vsel %vm802, %v801, %v796
  %v804 = vadd.s32 %v771, 4294967256
  %v805 = vlaneseq
  %v806 = vshrl.u32 %v805, 7
  %v807 = vsub.s32 %v804, %v806
  %v808 = vrot.slane %v743, %v807
  %vm809 = vcmask 392512
  %v810 = vsel %vm809, %v808, %v803
  %v811 = vadd.s32 %v771, 4294967248
  %v812 = vlaneseq
  %v813 = vshrl.u32 %v812, 7
  %v814 = vsub.s32 %v811, %v813
  %v815 = vrot.slane %v744, %v814
  %vm816 = vcmask 458112
  %v817 = vsel %vm816, %v815, %v810
  %v818 = vadd.s32 %v771, 4294967240
  %v819 = vlaneseq
  %v820 = vshrl.u32 %v819, 7
  %v821 = vsub.s32 %v818, %v820
  %v822 = vrot.slane %v745, %v821
  %vm823 = vcmask 523712
  %v824 = vsel %vm823, %v822, %v817
  %v825 = vadd.s32 %v771, 4294967232
  %v826 = vlaneseq
  %v827 = vshrl.u32 %v826, 7
  %v828 = vsub.s32 %v825, %v827
  %v829 = vrot.slane %v746, %v828
  %vm830 = vcmask 589312
  %v831 = vsel %vm830, %v829, %v824
  %v832 = vadd.s32 %v771, 4294967224
  %v833 = vlaneseq
  %v834 = vshrl.u32 %v833, 7
  %v835 = vsub.s32 %v832, %v834
  %v836 = vrot.slane %v747, %v835
  %vm837 = vcmask 654912
  %v838 = vsel %vm837, %v836, %v831
  %v839 = vadd.s32 %v771, 4294967216
  %v840 = vlaneseq
  %v841 = vshrl.u32 %v840, 7
  %v842 = vsub.s32 %v839, %v841
  %v843 = vrot.slane %v748, %v842
  %vm844 = vcmask 720512
  %v845 = vsel %vm844, %v843, %v838
  %v846 = vadd.s32 %v771, 4294967208
  %v847 = vlaneseq
  %v848 = vshrl.u32 %v847, 7
  %v849 = vsub.s32 %v846, %v848
  %v850 = vrot.slane %v749, %v849
  %vm851 = vcmask 786112
  %v852 = vsel %vm851, %v850, %v845
  %v853 = vadd.s32 %v771, 4294967200
  %v854 = vlaneseq
  %v855 = vshrl.u32 %v854, 7
  %v856 = vsub.s32 %v853, %v855
  %v857 = vrot.slane %v750, %v856
  %vm858 = vcmask 851712
  %v859 = vsel %vm858, %v857, %v852
  %v860 = vadd.s32 %v771, 4294967192
  %v861 = vlaneseq
  %v862 = vshrl.u32 %v861, 7
  %v863 = vsub.s32 %v860, %v862
  %v864 = vrot.slane %v751, %v863
  %vm865 = vcmask 917312
  %v866 = vsel %vm865, %v864, %v859
  %v867 = vadd.s32 %v771, 4294967184
  %v868 = vlaneseq
  %v869 = vshrl.u32 %v868, 7
  %v870 = vsub.s32 %v867, %v869
  %v871 = vrot.slane %v752, %v870
  %vm872 = vcmask 982912
  %v873 = vsel %vm872, %v871, %v866
  %v874 = vadd.s32 %v771, 4294967176
  %v875 = vlaneseq
  %v876 = vshrl.u32 %v875, 7
  %v877 = vsub.s32 %v874, %v876
  %v878 = vrot.slane %v753, %v877
  %vm879 = vcmask 1048512
  %v880 = vsel %vm879, %v878, %v873
  %882 = vst [vmem:[%s9] sm:$0x1] %v880
  // Predicated region
  $region38: #{reward_model_forward.1} parent=0 // pred_check
    _
  $region39: #{reward_model_forward.1} parent=0 // pred_check_branch
    %884 = sbr.rel (0) target = $region41
  $region40: #{reward_model_forward.1} parent=0 // pred_region
    _
  $region41: #{reward_model_forward.1} parent=0 // pred_fallthru
    _
  // Predicated region
  $region42: #{reward_model_forward.1} parent=0 // pred_check
    _
  $region43: #{reward_model_forward.1} parent=0 // pred_check_branch
    %886 = sbr.rel (0) target = $region45
  $region44: #{reward_model_forward.1} parent=0 // pred_region
    _
  $region45: #{reward_model_forward.1} parent=0 // pred_fallthru
    _

</llo_original>
